<compile_context>
chip_gen: v7x
topology: tpu7x:2x2x1
jax: 0.10.0
libtpu: 0.0.40
codegen_flags: <defaults>
</compile_context>

<pallas_src>
import jax
import jax.numpy as jnp
from jax.experimental import pallas as pl
from jax.experimental.pallas import tpu as pltpu

LN_EPS = 1e-5   # torch.nn.LayerNorm default
HIDDEN = 64


def _round_up(x, m):
    return (x + m - 1) // m * m


def _layernorm(h, gamma, beta):
    # f32 statistics, biased variance, eps inside rsqrt (matches torch).
    mu = jnp.mean(h, axis=-1, keepdims=True)
    var = jnp.mean((h - mu) * (h - mu), axis=-1, keepdims=True)
    return (h - mu) * jax.lax.rsqrt(var + LN_EPS) * gamma + beta


def soft_q_kernel(s_ref, a_ref, w1s_ref, w1a_ref, w2_ref, p_ref, o_ref):
    """One batch tile: q = MLP(concat(state, action))."""
    # Packed per-feature params (f32). Rows:
    #   0:b1  1:g1  2:be1  3:b2  4:g2  5:be2  6:w3^T  7:b3(broadcast)
    b1, g1, be1 = p_ref[0:1, :], p_ref[1:2, :], p_ref[2:3, :]
    b2, g2, be2 = p_ref[3:4, :], p_ref[4:5, :], p_ref[5:6, :]
    w3_row = p_ref[6:7, :]
    b3 = p_ref[7:8, 0:1]

    # Layer 1: fused-concat matmul, f32 accumulation on the MXU.
    h = (jnp.dot(s_ref[...], w1s_ref[...], preferred_element_type=jnp.float32)
         + jnp.dot(a_ref[...], w1a_ref[...], preferred_element_type=jnp.float32)
         + b1)
    h = jnp.tanh(h)                      # f32 on the EUP
    h = _layernorm(h, g1, be1)           # f32 stats

    # Layer 2 (input cast back to the streaming dtype for a native MXU dot).
    h = jnp.dot(h.astype(w2_ref.dtype), w2_ref[...],
                preferred_element_type=jnp.float32) + b2
    h = jnp.tanh(h)
    h = _layernorm(h, g2, be2)

    # Layer 3: Linear(64, 1) as VPU multiply + lane reduction
    # (avoids an N=1 MXU matmul).
    q = jnp.sum(h * w3_row, axis=-1, keepdims=True) + b3
    o_ref[...] = q.astype(o_ref.dtype)


def soft_q_forward(state, action, params, *, block_rows=1024,
                   compute_dtype=jnp.float32):
    """state: [B, num_inputs], action: [B, num_actions] -> q: [B, 1] (f32)."""
    B, n_in = state.shape
    _, n_act = action.shape
    H = HIDDEN

    # Split the first-layer weight so the concat never materializes.
    w1 = params["w1"]
    w1_s = w1[:n_in].astype(compute_dtype)
    w1_a = w1[n_in:].astype(compute_dtype)
    w2 = params["w2"].astype(compute_dtype)
    state = state.astype(compute_dtype)
    action = action.astype(compute_dtype)

    # Pack the tiny per-feature params into one (8, H) f32 array (one DMA,
    # resident in VMEM for the whole grid).
    packed = jnp.concatenate(
        [params["b1"], params["g1"], params["be1"],
         params["b2"], params["g2"], params["be2"],
         params["w3"].reshape(1, H),
         jnp.broadcast_to(params["b3"].reshape(1, 1), (1, H))],
        axis=0).astype(jnp.float32)

    # Batch tile: big enough to amortize the ~0.35 us/step overhead and hit
    # the HBM roofline, small enough for v7x's 64 MiB VMEM (fp32 live bytes
    # per step stay well under a few MiB at 1024 rows). Rounded to sublanes.
    tm = min(block_rows, _round_up(B, 8))
    B_pad = _round_up(B, tm)
    if B_pad != B:
        state = jnp.pad(state, ((0, B_pad - B), (0, 0)))
        action = jnp.pad(action, ((0, B_pad - B), (0, 0)))
    grid = (B_pad // tm,)

    in_bytes = jnp.dtype(compute_dtype).itemsize
    cost = pl.CostEstimate(
        flops=2 * B_pad * ((n_in + n_act) * H + H * H + H),
        transcendentals=2 * B_pad * H,
        bytes_accessed=(B_pad * (n_in + n_act) * in_bytes        # activations
                        + B_pad * 4                              # q output
                        + ((n_in + n_act) * H + H * H) * in_bytes
                        + 8 * H * 4),                            # packed params
    )

    out = pl.pallas_call(
        soft_q_kernel,
        out_shape=jax.ShapeDtypeStruct((B_pad, 1), jnp.float32),
        grid=grid,
        in_specs=[
            pl.BlockSpec((tm, n_in), lambda i: (i, 0)),     # state tile
            pl.BlockSpec((tm, n_act), lambda i: (i, 0)),    # action tile
            pl.BlockSpec((n_in, H), lambda i: (0, 0)),      # w1_s (resident)
            pl.BlockSpec((n_act, H), lambda i: (0, 0)),     # w1_a (resident)
            pl.BlockSpec((H, H), lambda i: (0, 0)),         # w2   (resident)
            pl.BlockSpec((8, H), lambda i: (0, 0)),         # packed params
        ],
        # TODO(synk): output last-dim=1 is lane-sparse (masked vst); a
        # lane-dense [grid, TM] layout would need an in-kernel (TM,1)->(1,TM)
        # relayout that is not guaranteed to lower on all generations.
        out_specs=pl.BlockSpec((tm, 1), lambda i: (i, 0)),
        compiler_params=pltpu.CompilerParams(
            dimension_semantics=("parallel",)),
        cost_estimate=cost,
    )(state, action, w1_s, w1_a, w2, packed)

    return out[:B]


def init_params(key, num_inputs, num_actions, hidden=HIDDEN):
    """Deterministic init mirroring the PyTorch module's shapes.

    Linear weights: xavier_uniform (as in init_weights); biases: zeros;
    LayerNorm: weight=1, bias=0 (PyTorch defaults). Weights stored as
    [in, out] (transpose of PyTorch's [out, in]) so forward is x @ W + b.
    """
    d_in = num_inputs + num_actions
    k1, k2, k3 = jax.random.split(key, 3)

    def xavier(k, fan_in, fan_out):
        limit = jnp.sqrt(6.0 / (fan_in + fan_out))
        return jax.random.uniform(k, (fan_in, fan_out), jnp.float32,
                                  minval=-limit, maxval=limit)

    return {
        "w1": xavier(k1, d_in, hidden),
        "b1": jnp.zeros((1, hidden), jnp.float32),
        "g1": jnp.ones((1, hidden), jnp.float32),
        "be1": jnp.zeros((1, hidden), jnp.float32),
        "w2": xavier(k2, hidden, hidden),
        "b2": jnp.zeros((1, hidden), jnp.float32),
        "g2": jnp.ones((1, hidden), jnp.float32),
        "be2": jnp.zeros((1, hidden), jnp.float32),
        "w3": xavier(k3, hidden, 1),
        "b3": jnp.zeros((1, 1), jnp.float32),
    }


def reference_forward(state, action, p):
    """Pure-JAX reference (matches PyTorch semantics) for verification."""
    x = jnp.concatenate([state, action], axis=1)
    h = jnp.tanh(x @ p["w1"] + p["b1"])
    h = _layernorm(h, p["g1"], p["be1"])
    h = jnp.tanh(h @ p["w2"] + p["b2"])
    h = _layernorm(h, p["g2"], p["be2"])
    return h @ p["w3"] + p["b3"]


if __name__ == "__main__":
    B, NUM_INPUTS, NUM_ACTIONS = 8, 16, 8

    key = jax.random.PRNGKey(0)
    k_s, k_a, k_p = jax.random.split(key, 3)

    state = jax.random.normal(k_s, (B, NUM_INPUTS), jnp.float32)
    action = jax.random.normal(k_a, (B, NUM_ACTIONS), jnp.float32)
    params = init_params(k_p, NUM_INPUTS, NUM_ACTIONS)

    q_ref = reference_forward(state, action, params)

    # f32 path (default): must match the PyTorch/JAX reference tightly.
    q = soft_q_forward(state, action, params)
    q = jax.block_until_ready(q)
    assert q.shape == (B, 1)
    # split-concat matmul changes summation order slightly -> loose f32 tol
    assert jnp.allclose(q, q_ref, atol=1e-4, rtol=1e-4), "f32 mismatch vs ref"

    # bf16 streaming path (v6e/v7x HBM-bandwidth optimization); f32 accumulate
    # + f32 tanh/LayerNorm keep it close to the reference.
    q_bf16 = soft_q_forward(state, action, params, compute_dtype=jnp.bfloat16)
    q_bf16 = jax.block_until_ready(q_bf16)
    assert q_bf16.shape == (B, 1)
    assert jnp.allclose(q_bf16, q_ref, atol=5e-2, rtol=5e-2), "bf16 mismatch"

    print("KERNEL_OK")
</pallas_src>

<mosaic_0001>
module attributes {stable_mosaic.version = 11 : i64} {
  func.func @soft_q_kernel(%arg0: i32, %arg1: memref<8x16xf32, #tpu.memory_space<vmem>>, %arg2: memref<8x8xf32, #tpu.memory_space<vmem>>, %arg3: memref<16x64xf32, #tpu.memory_space<vmem>>, %arg4: memref<8x64xf32, #tpu.memory_space<vmem>>, %arg5: memref<64x64xf32, #tpu.memory_space<vmem>>, %arg6: memref<8x64xf32, #tpu.memory_space<vmem>>, %arg7: memref<8x1xf32, #tpu.memory_space<vmem>>) attributes {dimension_semantics = [#tpu.dimension_semantics<parallel>], iteration_bounds = array<i64: 1>, scalar_prefetch = 0 : i64, scratch_operands = 0 : i64, tpu.core_type = #tpu.core_type<tc>, window_params = [{transform_indices = @transform_0, window_bounds = array<i64: 8, 16>}, {transform_indices = @transform_1, window_bounds = array<i64: 8, 8>}, {pipeline_mode = #tpu.pipeline_mode<synchronous>, transform_indices = @transform_2, window_bounds = array<i64: 16, 64>}, {pipeline_mode = #tpu.pipeline_mode<synchronous>, transform_indices = @transform_3, window_bounds = array<i64: 8, 64>}, {pipeline_mode = #tpu.pipeline_mode<synchronous>, transform_indices = @transform_4, window_bounds = array<i64: 64, 64>}, {pipeline_mode = #tpu.pipeline_mode<synchronous>, transform_indices = @transform_5, window_bounds = array<i64: 8, 64>}, {transform_indices = @transform_6, window_bounds = array<i64: 8, 1>}]} {
    %c0 = arith.constant 0 : index
    %c0_0 = arith.constant 0 : index
    %0 = vector.load %arg6[%c0, %c0_0] : memref<8x64xf32, #tpu.memory_space<vmem>>, vector<1x64xf32>
    %c1 = arith.constant 1 : index
    %c0_1 = arith.constant 0 : index
    %1 = vector.load %arg6[%c1, %c0_1] : memref<8x64xf32, #tpu.memory_space<vmem>>, vector<1x64xf32>
    %c2 = arith.constant 2 : index
    %c0_2 = arith.constant 0 : index
    %2 = vector.load %arg6[%c2, %c0_2] : memref<8x64xf32, #tpu.memory_space<vmem>>, vector<1x64xf32>
    %c3 = arith.constant 3 : index
    %c0_3 = arith.constant 0 : index
    %3 = vector.load %arg6[%c3, %c0_3] : memref<8x64xf32, #tpu.memory_space<vmem>>, vector<1x64xf32>
    %c4 = arith.constant 4 : index
    %c0_4 = arith.constant 0 : index
    %4 = vector.load %arg6[%c4, %c0_4] : memref<8x64xf32, #tpu.memory_space<vmem>>, vector<1x64xf32>
    %c5 = arith.constant 5 : index
    %c0_5 = arith.constant 0 : index
    %5 = vector.load %arg6[%c5, %c0_5] : memref<8x64xf32, #tpu.memory_space<vmem>>, vector<1x64xf32>
    %c6 = arith.constant 6 : index
    %c0_6 = arith.constant 0 : index
    %6 = vector.load %arg6[%c6, %c0_6] : memref<8x64xf32, #tpu.memory_space<vmem>>, vector<1x64xf32>
    %c7 = arith.constant 7 : index
    %c0_7 = arith.constant 0 : index
    %7 = vector.load %arg6[%c7, %c0_7] : memref<8x64xf32, #tpu.memory_space<vmem>>, vector<1x1xf32>
    %c0_8 = arith.constant 0 : index
    %c0_9 = arith.constant 0 : index
    %8 = vector.load %arg1[%c0_8, %c0_9] : memref<8x16xf32, #tpu.memory_space<vmem>>, vector<8x16xf32>
    %c0_10 = arith.constant 0 : index
    %c0_11 = arith.constant 0 : index
    %9 = vector.load %arg3[%c0_10, %c0_11] : memref<16x64xf32, #tpu.memory_space<vmem>>, vector<16x64xf32>
    %cst = arith.constant dense<0.000000e+00> : vector<8x64xf32>
    %10 = tpu.matmul %8, %9, %cst {dimension_numbers = #tpu.dot_dimension_numbers<[1], [0], [0], [1], [0, 0, 1, 1], [], []>} : vector<8x16xf32>, vector<16x64xf32>, vector<8x64xf32> -> vector<8x64xf32>
    %c0_12 = arith.constant 0 : index
    %c0_13 = arith.constant 0 : index
    %11 = vector.load %arg2[%c0_12, %c0_13] : memref<8x8xf32, #tpu.memory_space<vmem>>, vector<8x8xf32>
    %c0_14 = arith.constant 0 : index
    %c0_15 = arith.constant 0 : index
    %12 = vector.load %arg4[%c0_14, %c0_15] : memref<8x64xf32, #tpu.memory_space<vmem>>, vector<8x64xf32>
    %cst_16 = arith.constant dense<0.000000e+00> : vector<8x64xf32>
    %13 = tpu.matmul %11, %12, %cst_16 {dimension_numbers = #tpu.dot_dimension_numbers<[1], [0], [0], [1], [0, 0, 1, 1], [], []>} : vector<8x8xf32>, vector<8x64xf32>, vector<8x64xf32> -> vector<8x64xf32>
    %14 = arith.addf %10, %13 : vector<8x64xf32>
    %15 = vector.broadcast %0 : vector<1x64xf32> to vector<8x64xf32>
    %16 = arith.addf %14, %15 : vector<8x64xf32>
    %17 = math.tanh %16 : vector<8x64xf32>
    %cst_17 = arith.constant dense<0.000000e+00> : vector<8xf32>
    %18 = vector.multi_reduction <add>, %17, %cst_17 [1] : vector<8x64xf32> to vector<8xf32>
    %19 = vector.shape_cast %18 : vector<8xf32> to vector<8x1xf32>
    %cst_18 = arith.constant 6.400000e+01 : f32
    %20 = vector.broadcast %cst_18 : f32 to vector<8x1xf32>
    %21 = arith.divf %19, %20 : vector<8x1xf32>
    %22 = vector.broadcast %21 : vector<8x1xf32> to vector<8x64xf32>
    %23 = arith.subf %17, %22 : vector<8x64xf32>
    %24 = vector.broadcast %21 : vector<8x1xf32> to vector<8x64xf32>
    %25 = arith.subf %17, %24 : vector<8x64xf32>
    %26 = arith.mulf %23, %25 : vector<8x64xf32>
    %cst_19 = arith.constant dense<0.000000e+00> : vector<8xf32>
    %27 = vector.multi_reduction <add>, %26, %cst_19 [1] : vector<8x64xf32> to vector<8xf32>
    %28 = vector.shape_cast %27 : vector<8xf32> to vector<8x1xf32>
    %cst_20 = arith.constant 6.400000e+01 : f32
    %29 = vector.broadcast %cst_20 : f32 to vector<8x1xf32>
    %30 = arith.divf %28, %29 : vector<8x1xf32>
    %31 = vector.broadcast %21 : vector<8x1xf32> to vector<8x64xf32>
    %32 = arith.subf %17, %31 : vector<8x64xf32>
    %cst_21 = arith.constant 9.99999974E-6 : f32
    %33 = vector.broadcast %cst_21 : f32 to vector<8x1xf32>
    %34 = arith.addf %30, %33 : vector<8x1xf32>
    %35 = math.rsqrt %34 : vector<8x1xf32>
    %36 = vector.broadcast %35 : vector<8x1xf32> to vector<8x64xf32>
    %37 = arith.mulf %32, %36 : vector<8x64xf32>
    %38 = vector.broadcast %1 : vector<1x64xf32> to vector<8x64xf32>
    %39 = arith.mulf %37, %38 : vector<8x64xf32>
    %40 = vector.broadcast %2 : vector<1x64xf32> to vector<8x64xf32>
    %41 = arith.addf %39, %40 : vector<8x64xf32>
    %c0_22 = arith.constant 0 : index
    %c0_23 = arith.constant 0 : index
    %42 = vector.load %arg5[%c0_22, %c0_23] : memref<64x64xf32, #tpu.memory_space<vmem>>, vector<64x64xf32>
    %cst_24 = arith.constant dense<0.000000e+00> : vector<8x64xf32>
    %43 = tpu.matmul %41, %42, %cst_24 {dimension_numbers = #tpu.dot_dimension_numbers<[1], [0], [0], [1], [0, 0, 1, 1], [], []>} : vector<8x64xf32>, vector<64x64xf32>, vector<8x64xf32> -> vector<8x64xf32>
    %44 = vector.broadcast %3 : vector<1x64xf32> to vector<8x64xf32>
    %45 = arith.addf %43, %44 : vector<8x64xf32>
    %46 = math.tanh %45 : vector<8x64xf32>
    %cst_25 = arith.constant dense<0.000000e+00> : vector<8xf32>
    %47 = vector.multi_reduction <add>, %46, %cst_25 [1] : vector<8x64xf32> to vector<8xf32>
    %48 = vector.shape_cast %47 : vector<8xf32> to vector<8x1xf32>
    %cst_26 = arith.constant 6.400000e+01 : f32
    %49 = vector.broadcast %cst_26 : f32 to vector<8x1xf32>
    %50 = arith.divf %48, %49 : vector<8x1xf32>
    %51 = vector.broadcast %50 : vector<8x1xf32> to vector<8x64xf32>
    %52 = arith.subf %46, %51 : vector<8x64xf32>
    %53 = vector.broadcast %50 : vector<8x1xf32> to vector<8x64xf32>
    %54 = arith.subf %46, %53 : vector<8x64xf32>
    %55 = arith.mulf %52, %54 : vector<8x64xf32>
    %cst_27 = arith.constant dense<0.000000e+00> : vector<8xf32>
    %56 = vector.multi_reduction <add>, %55, %cst_27 [1] : vector<8x64xf32> to vector<8xf32>
    %57 = vector.shape_cast %56 : vector<8xf32> to vector<8x1xf32>
    %cst_28 = arith.constant 6.400000e+01 : f32
    %58 = vector.broadcast %cst_28 : f32 to vector<8x1xf32>
    %59 = arith.divf %57, %58 : vector<8x1xf32>
    %60 = vector.broadcast %50 : vector<8x1xf32> to vector<8x64xf32>
    %61 = arith.subf %46, %60 : vector<8x64xf32>
    %cst_29 = arith.constant 9.99999974E-6 : f32
    %62 = vector.broadcast %cst_29 : f32 to vector<8x1xf32>
    %63 = arith.addf %59, %62 : vector<8x1xf32>
    %64 = math.rsqrt %63 : vector<8x1xf32>
    %65 = vector.broadcast %64 : vector<8x1xf32> to vector<8x64xf32>
    %66 = arith.mulf %61, %65 : vector<8x64xf32>
    %67 = vector.broadcast %4 : vector<1x64xf32> to vector<8x64xf32>
    %68 = arith.mulf %66, %67 : vector<8x64xf32>
    %69 = vector.broadcast %5 : vector<1x64xf32> to vector<8x64xf32>
    %70 = arith.addf %68, %69 : vector<8x64xf32>
    %71 = vector.broadcast %6 : vector<1x64xf32> to vector<8x64xf32>
    %72 = arith.mulf %70, %71 : vector<8x64xf32>
    %cst_30 = arith.constant dense<0.000000e+00> : vector<8xf32>
    %73 = vector.multi_reduction <add>, %72, %cst_30 [1] : vector<8x64xf32> to vector<8xf32>
    %74 = vector.shape_cast %73 : vector<8xf32> to vector<8x1xf32>
    %75 = vector.broadcast %7 : vector<1x1xf32> to vector<8x1xf32>
    %76 = arith.addf %74, %75 : vector<8x1xf32>
    %c0_31 = arith.constant 0 : index
    %c0_32 = arith.constant 0 : index
    %77 = vector.load %arg7[%c0_31, %c0_32] : memref<8x1xf32, #tpu.memory_space<vmem>>, vector<8x1xf32>
    tpu.vector_store %arg7[%c0_31, %c0_32], %76 {strides = array<i32>} : memref<8x1xf32, #tpu.memory_space<vmem>>, vector<8x1xf32>,
    return
  }
  func.func @transform_0(%arg0: i32) -> (i32, i32) {
    %c0_i32 = arith.constant 0 : i32
    %c0_i32_0 = arith.constant 0 : i32
    return %arg0, %c0_i32 : i32, i32
  }
  func.func @transform_1(%arg0: i32) -> (i32, i32) {
    %c0_i32 = arith.constant 0 : i32
    %c0_i32_0 = arith.constant 0 : i32
    return %arg0, %c0_i32 : i32, i32
  }
  func.func @transform_2(%arg0: i32) -> (i32, i32) {
    %c0_i32 = arith.constant 0 : i32
    %c0_i32_0 = arith.constant 0 : i32
    %c0_i32_1 = arith.constant 0 : i32
    return %c0_i32, %c0_i32_0 : i32, i32
  }
  func.func @transform_3(%arg0: i32) -> (i32, i32) {
    %c0_i32 = arith.constant 0 : i32
    %c0_i32_0 = arith.constant 0 : i32
    %c0_i32_1 = arith.constant 0 : i32
    return %c0_i32, %c0_i32_0 : i32, i32
  }
  func.func @transform_4(%arg0: i32) -> (i32, i32) {
    %c0_i32 = arith.constant 0 : i32
    %c0_i32_0 = arith.constant 0 : i32
    %c0_i32_1 = arith.constant 0 : i32
    return %c0_i32, %c0_i32_0 : i32, i32
  }
  func.func @transform_5(%arg0: i32) -> (i32, i32) {
    %c0_i32 = arith.constant 0 : i32
    %c0_i32_0 = arith.constant 0 : i32
    %c0_i32_1 = arith.constant 0 : i32
    return %c0_i32, %c0_i32_0 : i32, i32
  }
  func.func @transform_6(%arg0: i32) -> (i32, i32) {
    %c0_i32 = arith.constant 0 : i32
    %c0_i32_0 = arith.constant 0 : i32
    return %arg0, %c0_i32 : i32, i32
  }
}

</mosaic_0001>

<llo_original>
// kernel: tpu_custom_call.1
$region0: #{tpu_custom_call.1}
  #allocation0 [shape = 'u32[]', space=smem, size = 0x4, offset = 0x4, fixed_abs, tag = 'smem constant byte address 0x4 - core index']
  #allocation1 [shape = 'u32[144,128]{1,0:T(1,128)}', space=vmem, size = 0x12000, scoped, tag = 'internal scratch']
  %s0 = inlined_call_operand.hbm [shape: f32[8,16], index: 0, kind: input, shape index: {}]
  %s1 = inlined_call_operand.hbm [shape: f32[8,8], index: 1, kind: input, shape index: {}]
  %s2 = inlined_call_operand.hbm [shape: f32[16,64], index: 2, kind: input, shape index: {}]
  %s3 = inlined_call_operand.vmem [shape: f32[8,64], index: 3, kind: input, shape index: {}]
  %s4 = inlined_call_operand.hbm [shape: f32[64,64], index: 4, kind: input, shape index: {}]
  %s5 = inlined_call_operand.vmem [shape: f32[8,64], index: 5, kind: input, shape index: {}]
  %s6 = inlined_call_operand.vmem [shape: f32[8,1], index: 6, kind: output, shape index: {}]
  %s7 = sld [smem:[#allocation0]]
  $region50: #{tpu_custom_call.1} parent=0
    _
  %s9 = ssub.s32 1, %s7
  %s10 = scalar_select 0, %s9, %s7
  $region1: #{tpu_custom_call.1} parent=0
    #allocation2 [shape = 'u8[4096]{0}', space=vmem, size = 0x1000, scoped, tag = 'input window, operand 0, single buffered']
    #allocation3 [shape = 's32[1]{0}', space=sflag, size = 0x4, scoped, tag = 'scoped memory for tpu_custom_call.1']
    #allocation4 [shape = 'u8[4096]{0}', space=vmem, size = 0x1000, scoped, tag = 'input window, operand 1, single buffered']
    #allocation5 [shape = 's32[1]{0}', space=sflag, size = 0x4, scoped, tag = 'scoped memory for tpu_custom_call.1']
    #allocation6 [shape = 'u8[8192]{0}', space=vmem, size = 0x2000, scoped, tag = 'input window, operand 2, single buffered']
    #allocation7 [shape = 'u8[32768]{0}', space=vmem, size = 0x8000, scoped, tag = 'input window, operand 4, single buffered']
    #allocation8 [shape = 's32[1]{0}', space=sflag, size = 0x4, scoped, tag = 'scoped memory for tpu_custom_call.1']
    %11 = vsyncpa [#allocation3], 0
    %12 = vsyncpa [#allocation5], 0
    %13 = vsyncpa [#allocation8], 0
    // Predicated region
    $region2: #{tpu_custom_call.1} parent=1 // pred_check
      _
    $region3: #{tpu_custom_call.1} parent=1 // pred_check_branch
      %15 = sbr.rel (0) target = $region5
    $region4: #{tpu_custom_call.1} parent=1 // pred_region
      %s17 = ssub.s32 128, 128
      %18 = vsyncadd [#allocation3], %s17
      %s20 = sshll.u32 [#allocation2], 4
      %s21 = int_to_ptr.vmem [resolvable:$true] %s20
      %23 = dma.hbm_to_vmem [thread:$0]  %s0, 128, %s21, [#allocation3]
    $region5: #{tpu_custom_call.1} parent=1 // pred_fallthru
      _
    // Predicated region
    $region6: #{tpu_custom_call.1} parent=1 // pred_check
      _
    $region7: #{tpu_custom_call.1} parent=1 // pred_check_branch
      %25 = sbr.rel (0) target = $region9
    $region8: #{tpu_custom_call.1} parent=1 // pred_region
      %s27 = ssub.s32 128, 128
      %28 = vsyncadd [#allocation5], %s27
      %s30 = sshll.u32 [#allocation4], 4
      %s31 = int_to_ptr.vmem [resolvable:$true] %s30
      %33 = dma.hbm_to_vmem [thread:$0]  %s1, 128, %s31, [#allocation5]
    $region9: #{tpu_custom_call.1} parent=1 // pred_fallthru
      _
    // Predicated region
    $region10: #{tpu_custom_call.1} parent=1 // pred_check
      _
    $region11: #{tpu_custom_call.1} parent=1 // pred_check_branch
      %35 = sbr.rel (0) target = $region13
    $region12: #{tpu_custom_call.1} parent=1 // pred_region
      %s37 = ssub.s32 256, 256
      %38 = vsyncadd [#allocation5], %s37
      %s39 = sshll.u32 [#allocation6], 4
      %s40 = int_to_ptr.vmem [resolvable:$true] %s39
      %45 = dma.hbm_to_vmem [thread:$0]  %s2, 256, %s40, [#allocation5], 128, 128, 8
    $region13: #{tpu_custom_call.1} parent=1 // pred_fallthru
      _
    // Predicated region
    $region14: #{tpu_custom_call.1} parent=1 // pred_check
      _
    $region15: #{tpu_custom_call.1} parent=1 // pred_check_branch
      %47 = sbr.rel (0) target = $region17
    $region16: #{tpu_custom_call.1} parent=1 // pred_region
      _
    $region17: #{tpu_custom_call.1} parent=1 // pred_fallthru
      _
    // Predicated region
    $region18: #{tpu_custom_call.1} parent=1 // pred_check
      _
    $region19: #{tpu_custom_call.1} parent=1 // pred_check_branch
      %49 = sbr.rel (0) target = $region21
    $region20: #{tpu_custom_call.1} parent=1 // pred_region
      %s51 = ssub.s32 1024, 1024
      %52 = vsyncadd [#allocation8], %s51
      %s53 = sshll.u32 [#allocation7], 4
      %s54 = int_to_ptr.vmem [resolvable:$true] %s53
      %59 = dma.hbm_to_vmem [thread:$0]  %s4, 1024, %s54, [#allocation8], 128, 128, 8
    $region21: #{tpu_custom_call.1} parent=1 // pred_fallthru
      _
    // Predicated region
    $region22: #{tpu_custom_call.1} parent=1 // pred_check
      _
    $region23: #{tpu_custom_call.1} parent=1 // pred_check_branch
      %61 = sbr.rel (0) target = $region25
    $region24: #{tpu_custom_call.1} parent=1 // pred_region
      _
    $region25: #{tpu_custom_call.1} parent=1 // pred_fallthru
      _
    // Predicated region
    $region26: #{tpu_custom_call.1} parent=1 // pred_check
      _
    $region27: #{tpu_custom_call.1} parent=1 // pred_check_branch
      %63 = sbr.rel (0) target = $region29
    $region28: #{tpu_custom_call.1} parent=1 // pred_region
      %64 = dma.done [#allocation3], 128
    $region29: #{tpu_custom_call.1} parent=1 // pred_fallthru
      _
    // Predicated region
    $region30: #{tpu_custom_call.1} parent=1 // pred_check
      _
    $region31: #{tpu_custom_call.1} parent=1 // pred_check_branch
      %66 = sbr.rel (0) target = $region33
    $region32: #{tpu_custom_call.1} parent=1 // pred_region
      %67 = dma.done [#allocation5], 128
    $region33: #{tpu_custom_call.1} parent=1 // pred_fallthru
      _
    // Predicated region
    $region34: #{tpu_custom_call.1} parent=1 // pred_check
      _
    $region35: #{tpu_custom_call.1} parent=1 // pred_check_branch
      %69 = sbr.rel (0) target = $region37
    $region36: #{tpu_custom_call.1} parent=1 // pred_region
      %70 = dma.done [#allocation5], 256
    $region37: #{tpu_custom_call.1} parent=1 // pred_fallthru
      _
    // Predicated region
    $region38: #{tpu_custom_call.1} parent=1 // pred_check
      _
    $region39: #{tpu_custom_call.1} parent=1 // pred_check_branch
      %72 = sbr.rel (0) target = $region41
    $region40: #{tpu_custom_call.1} parent=1 // pred_region
      %73 = dma.done [#allocation8], 1024
    $region41: #{tpu_custom_call.1} parent=1 // pred_fallthru
      _
    %v74 = vld [vmem:[%s5] sm:$0x1]
    %v75 = vld [vmem:[%s5 + $0x1] sm:$0x1]
    %v76 = vld [vmem:[%s5 + $0x2] sm:$0x1]
    %v77 = vld [vmem:[%s5 + $0x3] sm:$0x1]
    %v78 = vld [vmem:[%s5 + $0x4] sm:$0x1]
    %v79 = vld [vmem:[%s5 + $0x5] sm:$0x1]
    %v80 = vld [vmem:[%s5 + $0x6] sm:$0x1]
    %v81 = vld [vmem:[%s5 + $0x7] sm:$0x1]
    %v82 = vld [vmem:[#allocation2] sm:$0xff]
    %v83 = vld [vmem:[#allocation6] sm:$0xff]
    %v84 = vld [vmem:[#allocation6 + $0x8] sm:$0xff]
    %v85 = vld [vmem:[#allocation4] sm:$0xff]
    %v86 = vld [vmem:[%s3] sm:$0xff]
    %vm87 = vcmask 64512
    %v89 = vsel %vm87, %v85, 0
    %91 = vmatprep.subr.mxu0 0.0
    %92 = vmatpush1.msra.mxu0 %v86
    %93 = vmatprep.subr.mxu0 0.0
    %94 = vmatpush1.msra.mxu0 0.0
    %95 = vmatprep.subr.mxu0 0.0
    %96 = vmatpush1.msra.mxu0 0.0
    %97 = vmatprep.subr.mxu0 0.0
    %98 = vmatpush1.msra.mxu0 0.0
    %99 = vmatprep.subr.mxu0 0.0
    %100 = vmatpush1.msra.mxu0 0.0
    %101 = vmatprep.subr.mxu0 0.0
    %102 = vmatpush1.msra.mxu0 0.0
    %103 = vmatprep.subr.mxu0 0.0
    %104 = vmatpush1.msra.mxu0 0.0
    %105 = vmatprep.subr.mxu0 0.0
    %106 = vmatpush1.msra.mxu0 0.0
    %107 = vmatprep.subr.mxu0 0.0
    %108 = vmatpush1.msra.mxu0 0.0
    %109 = vmatprep.subr.mxu0 0.0
    %110 = vmatpush1.msra.mxu0 0.0
    %111 = vmatprep.subr.mxu0 0.0
    %112 = vmatpush1.msra.mxu0 0.0
    %113 = vmatprep.subr.mxu0 0.0
    %114 = vmatpush1.msra.mxu0 0.0
    %115 = vmatprep.subr.mxu0 0.0
    %116 = vmatpush1.msra.mxu0 0.0
    %117 = vmatprep.subr.mxu0 0.0
    %118 = vmatpush1.msra.mxu0 0.0
    %119 = vmatprep.subr.mxu0 0.0
    %120 = vmatpush1.msra.mxu0 0.0
    %121 = vmatprep.subr.mxu0 0.0
    %122 = vmatpush1.msra.mxu0 0.0
    %123 = vmatprep.subr.mxu0 0.0
    %124 = vmatpush1.msra.mxu0 0.0
    %125 = vmatprep.subr.mxu0 0.0
    %126 = vmatpush1.msra.mxu0 0.0
    %127 = vmatprep.subr.mxu0 0.0
    %128 = vmatpush1.msra.mxu0 0.0
    %129 = vmatprep.subr.mxu0 0.0
    %130 = vmatpush1.msra.mxu0 0.0
    %131 = vmatprep.subr.mxu0 0.0
    %132 = vmatpush1.msra.mxu0 0.0
    %133 = vmatprep.subr.mxu0 0.0
    %134 = vmatpush1.msra.mxu0 0.0
    %135 = vmatprep.subr.mxu0 0.0
    %136 = vmatpush1.msra.mxu0 0.0
    %137 = vmatprep.subr.mxu0 0.0
    %138 = vmatpush1.msra.mxu0 0.0
    %139 = vmatprep.subr.mxu0 0.0
    %140 = vmatpush1.msra.mxu0 0.0
    %141 = vmatprep.subr.mxu0 0.0
    %142 = vmatpush1.msra.mxu0 0.0
    %143 = vmatprep.subr.mxu0 0.0
    %144 = vmatpush1.msra.mxu0 0.0
    %145 = vmatprep.subr.mxu0 0.0
    %146 = vmatpush1.msra.mxu0 0.0
    %147 = vmatprep.subr.mxu0 0.0
    %148 = vmatpush1.msra.mxu0 0.0
    %149 = vmatprep.subr.mxu0 0.0
    %150 = vmatpush1.msra.mxu0 0.0
    %151 = vmatprep.subr.mxu0 0.0
    %152 = vmatpush1.msra.mxu0 0.0
    %153 = vmatprep.subr.mxu0 0.0
    %154 = vmatpush1.msra.mxu0 0.0
    %155 = vmatprep.mubr.f32.mxu0 0.0
    %156 = vmatmul.mubr.f32.gmra.mrb[0].mxu0 %v89
    %v157 = vpop.f32.mrb[0].mxu0
    %v158 = vadd.f32 0.0, %v157
    %v159 = vpop.f32.mrb[0].mxu0
    %160 = vdwg.mxu0
    %vm161 = vcmask 130048
    %v163 = vsel %vm161, %v82, 0
    %165 = vmatprep.subr.mxu0 0.0
    %166 = vmatpush1.msra.mxu0 %v83
    %167 = vmatprep.subr.mxu0 0.0
    %168 = vmatpush1.msra.mxu0 %v84
    %169 = vmatprep.subr.mxu0 0.0
    %170 = vmatpush1.msra.mxu0 0.0
    %171 = vmatprep.subr.mxu0 0.0
    %172 = vmatpush1.msra.mxu0 0.0
    %173 = vmatprep.subr.mxu0 0.0
    %174 = vmatpush1.msra.mxu0 0.0
    %175 = vmatprep.subr.mxu0 0.0
    %176 = vmatpush1.msra.mxu0 0.0
    %177 = vmatprep.subr.mxu0 0.0
    %178 = vmatpush1.msra.mxu0 0.0
    %179 = vmatprep.subr.mxu0 0.0
    %180 = vmatpush1.msra.mxu0 0.0
    %181 = vmatprep.subr.mxu0 0.0
    %182 = vmatpush1.msra.mxu0 0.0
    %183 = vmatprep.subr.mxu0 0.0
    %184 = vmatpush1.msra.mxu0 0.0
    %185 = vmatprep.subr.mxu0 0.0
    %186 = vmatpush1.msra.mxu0 0.0
    %187 = vmatprep.subr.mxu0 0.0
    %188 = vmatpush1.msra.mxu0 0.0
    %189 = vmatprep.subr.mxu0 0.0
    %190 = vmatpush1.msra.mxu0 0.0
    %191 = vmatprep.subr.mxu0 0.0
    %192 = vmatpush1.msra.mxu0 0.0
    %193 = vmatprep.subr.mxu0 0.0
    %194 = vmatpush1.msra.mxu0 0.0
    %195 = vmatprep.subr.mxu0 0.0
    %196 = vmatpush1.msra.mxu0 0.0
    %197 = vmatprep.subr.mxu0 0.0
    %198 = vmatpush1.msra.mxu0 0.0
    %199 = vmatprep.subr.mxu0 0.0
    %200 = vmatpush1.msra.mxu0 0.0
    %201 = vmatprep.subr.mxu0 0.0
    %202 = vmatpush1.msra.mxu0 0.0
    %203 = vmatprep.subr.mxu0 0.0
    %204 = vmatpush1.msra.mxu0 0.0
    %205 = vmatprep.subr.mxu0 0.0
    %206 = vmatpush1.msra.mxu0 0.0
    %207 = vmatprep.subr.mxu0 0.0
    %208 = vmatpush1.msra.mxu0 0.0
    %209 = vmatprep.subr.mxu0 0.0
    %210 = vmatpush1.msra.mxu0 0.0
    %211 = vmatprep.subr.mxu0 0.0
    %212 = vmatpush1.msra.mxu0 0.0
    %213 = vmatprep.subr.mxu0 0.0
    %214 = vmatpush1.msra.mxu0 0.0
    %215 = vmatprep.subr.mxu0 0.0
    %216 = vmatpush1.msra.mxu0 0.0
    %217 = vmatprep.subr.mxu0 0.0
    %218 = vmatpush1.msra.mxu0 0.0
    %219 = vmatprep.subr.mxu0 0.0
    %220 = vmatpush1.msra.mxu0 0.0
    %221 = vmatprep.subr.mxu0 0.0
    %222 = vmatpush1.msra.mxu0 0.0
    %223 = vmatprep.subr.mxu0 0.0
    %224 = vmatpush1.msra.mxu0 0.0
    %225 = vmatprep.subr.mxu0 0.0
    %226 = vmatpush1.msra.mxu0 0.0
    %227 = vmatprep.subr.mxu0 0.0
    %228 = vmatpush1.msra.mxu0 0.0
    %229 = vmatprep.mubr.f32.mxu0 0.0
    %230 = vmatmul.mubr.f32.gmra.mrb[0].mxu0 %v163
    %v231 = vpop.f32.mrb[0].mxu0
    %v232 = vadd.f32 %v158, %v231
    %v233 = vpop.f32.mrb[0].mxu0
    %234 = vdwg.mxu0
    %v235 = vlaneseq
    %v236 = vshrl.u32 %v235, 7
    %v237 = vsub.s32 0, %v236
    %v238 = vrot.slane %v74, %v237
    %v239 = vadd.f32 %v232, %v238
    %v240 = vtanh.pop %v239
    %vm241 = vcmask 523264
    %v242 = vsel %vm241, %v240, 0.0
    %243 = vadd.xlane.f32.xlu0 %v242
    %v244 = vpop.xlane.xlu0 %243
    %v245 = vrcp.pop 64.0
    %v246 = vmul.f32 %v244, %v245
    %v247 = vsub.f32 %v240, %v246
    %v248 = vmul.f32 %v247, %v247
    %v249 = vsel %vm241, %v248, 0.0
    %250 = vadd.xlane.f32.xlu0 %v249
    %v251 = vpop.xlane.xlu0 %250
    %v252 = vmul.f32 %v251, %v245
    %v253 = vadd.f32 %v252, 1e-05
    %v254 = vrsqrt.pop %v253
    %v255 = vmul.f32 %v247, %v254
    %v256 = vlaneseq
    %v257 = vshrl.u32 %v256, 7
    %v258 = vsub.s32 0, %v257
    %v259 = vrot.slane %v75, %v258
    %v260 = vmul.f32 %v255, %v259
    %v261 = vlaneseq
    %v262 = vshrl.u32 %v261, 7
    %v263 = vsub.s32 0, %v262
    %v264 = vrot.slane %v76, %v263
    %v265 = vadd.f32 %v260, %v264
    %v266 = vld [vmem:[#allocation7] sm:$0xff]
    %v267 = vld [vmem:[#allocation7 + $0x8] sm:$0xff]
    %v268 = vld [vmem:[#allocation7 + $0x10] sm:$0xff]
    %v269 = vld [vmem:[#allocation7 + $0x18] sm:$0xff]
    %v270 = vld [vmem:[#allocation7 + $0x20] sm:$0xff]
    %v271 = vld [vmem:[#allocation7 + $0x28] sm:$0xff]
    %v272 = vld [vmem:[#allocation7 + $0x30] sm:$0xff]
    %v273 = vld [vmem:[#allocation7 + $0x38] sm:$0xff]
    %v274 = vlaneseq
    %v275 = vshrl.u32 %v274, 7
    %v276 = vsub.s32 0, %v275
    %v277 = vrot.slane %v77, %v276
    %v279 = vsel %vm241, %v265, 0
    %281 = vmatprep.subr.mxu0 0.0
    %282 = vmatpush1.msra.mxu0 %v266
    %283 = vmatprep.subr.mxu0 0.0
    %284 = vmatpush1.msra.mxu0 %v267
    %285 = vmatprep.subr.mxu0 0.0
    %286 = vmatpush1.msra.mxu0 %v268
    %287 = vmatprep.subr.mxu0 0.0
    %288 = vmatpush1.msra.mxu0 %v269
    %289 = vmatprep.subr.mxu0 0.0
    %290 = vmatpush1.msra.mxu0 %v270
    %291 = vmatprep.subr.mxu0 0.0
    %292 = vmatpush1.msra.mxu0 %v271
    %293 = vmatprep.subr.mxu0 0.0
    %294 = vmatpush1.msra.mxu0 %v272
    %295 = vmatprep.subr.mxu0 0.0
    %296 = vmatpush1.msra.mxu0 %v273
    %297 = vmatprep.subr.mxu0 0.0
    %298 = vmatpush1.msra.mxu0 0.0
    %299 = vmatprep.subr.mxu0 0.0
    %300 = vmatpush1.msra.mxu0 0.0
    %301 = vmatprep.subr.mxu0 0.0
    %302 = vmatpush1.msra.mxu0 0.0
    %303 = vmatprep.subr.mxu0 0.0
    %304 = vmatpush1.msra.mxu0 0.0
    %305 = vmatprep.subr.mxu0 0.0
    %306 = vmatpush1.msra.mxu0 0.0
    %307 = vmatprep.subr.mxu0 0.0
    %308 = vmatpush1.msra.mxu0 0.0
    %309 = vmatprep.subr.mxu0 0.0
    %310 = vmatpush1.msra.mxu0 0.0
    %311 = vmatprep.subr.mxu0 0.0
    %312 = vmatpush1.msra.mxu0 0.0
    %313 = vmatprep.subr.mxu0 0.0
    %314 = vmatpush1.msra.mxu0 0.0
    %315 = vmatprep.subr.mxu0 0.0
    %316 = vmatpush1.msra.mxu0 0.0
    %317 = vmatprep.subr.mxu0 0.0
    %318 = vmatpush1.msra.mxu0 0.0
    %319 = vmatprep.subr.mxu0 0.0
    %320 = vmatpush1.msra.mxu0 0.0
    %321 = vmatprep.subr.mxu0 0.0
    %322 = vmatpush1.msra.mxu0 0.0
    %323 = vmatprep.subr.mxu0 0.0
    %324 = vmatpush1.msra.mxu0 0.0
    %325 = vmatprep.subr.mxu0 0.0
    %326 = vmatpush1.msra.mxu0 0.0
    %327 = vmatprep.subr.mxu0 0.0
    %328 = vmatpush1.msra.mxu0 0.0
    %329 = vmatprep.subr.mxu0 0.0
    %330 = vmatpush1.msra.mxu0 0.0
    %331 = vmatprep.subr.mxu0 0.0
    %332 = vmatpush1.msra.mxu0 0.0
    %333 = vmatprep.subr.mxu0 0.0
    %334 = vmatpush1.msra.mxu0 0.0
    %335 = vmatprep.subr.mxu0 0.0
    %336 = vmatpush1.msra.mxu0 0.0
    %337 = vmatprep.subr.mxu0 0.0
    %338 = vmatpush1.msra.mxu0 0.0
    %339 = vmatprep.subr.mxu0 0.0
    %340 = vmatpush1.msra.mxu0 0.0
    %341 = vmatprep.subr.mxu0 0.0
    %342 = vmatpush1.msra.mxu0 0.0
    %343 = vmatprep.subr.mxu0 0.0
    %344 = vmatpush1.msra.mxu0 0.0
    %345 = vmatprep.mubr.f32.mxu0 0.0
    %346 = vmatmul.mubr.f32.gmra.mrb[0].mxu0 %v279
    %v347 = vpop.f32.mrb[0].mxu0
    %v348 = vadd.f32 %v277, %v347
    %v349 = vpop.f32.mrb[0].mxu0
    %350 = vdwg.mxu0
    %v351 = vtanh.pop %v348
    %v352 = vsel %vm241, %v351, 0.0
    %353 = vadd.xlane.f32.xlu0 %v352
    %v354 = vpop.xlane.xlu0 %353
    %v355 = vmul.f32 %v354, %v245
    %v356 = vsub.f32 %v351, %v355
    %v357 = vmul.f32 %v356, %v356
    %v358 = vsel %vm241, %v357, 0.0
    %359 = vadd.xlane.f32.xlu0 %v358
    %v360 = vpop.xlane.xlu0 %359
    %v361 = vmul.f32 %v360, %v245
    %v362 = vadd.f32 %v361, 1e-05
    %v363 = vrsqrt.pop %v362
    %v364 = vmul.f32 %v356, %v363
    %v365 = vlaneseq
    %v366 = vshrl.u32 %v365, 7
    %v367 = vsub.s32 0, %v366
    %v368 = vrot.slane %v78, %v367
    %v369 = vmul.f32 %v364, %v368
    %v370 = vlaneseq
    %v371 = vshrl.u32 %v370, 7
    %v372 = vsub.s32 0, %v371
    %v373 = vrot.slane %v79, %v372
    %v374 = vadd.f32 %v369, %v373
    %v375 = vlaneseq
    %v376 = vshrl.u32 %v375, 7
    %v377 = vsub.s32 0, %v376
    %v378 = vrot.slane %v80, %v377
    %v379 = vmul.f32 %v374, %v378
    %v380 = vsel %vm241, %v379, 0.0
    %381 = vadd.xlane.f32.xlu0 %v380
    %v382 = vpop.xlane.xlu0 %381
    %v383 = vlaneseq
    %v384 = vshrl.u32 %v383, 7
    %v385 = vsub.s32 0, %v384
    %v386 = vrot.slane %v81, %v385
    %v387 = vadd.f32 %v382, %v386
    %vm388 = vcmask 7168
    %389 = vst.msk [vmem:[%s6] sm:$0xff] %vm388, %v387
    // Predicated region
    $region42: #{tpu_custom_call.1} parent=1 // pred_check
      _
    $region43: #{tpu_custom_call.1} parent=1 // pred_check_branch
      %391 = sbr.rel (0) target = $region45
    $region44: #{tpu_custom_call.1} parent=1 // pred_region
      _
    $region45: #{tpu_custom_call.1} parent=1 // pred_fallthru
      _
    // Predicated region
    $region46: #{tpu_custom_call.1} parent=1 // pred_check
      _
    $region47: #{tpu_custom_call.1} parent=1 // pred_check_branch
      %393 = sbr.rel (0) target = $region49
    $region48: #{tpu_custom_call.1} parent=1 // pred_region
      _
    $region49: #{tpu_custom_call.1} parent=1 // pred_fallthru
      _
    %394 = vsyncpa [#allocation3], 1
    %395 = vsyncpa [#allocation5], 1
    %396 = vsyncpa [#allocation8], 1

</llo_original>
